<compile_context>
chip_gen: v7x
topology: tpu7x:2x2x1
jax: 0.10.0
libtpu: 0.0.40
codegen_flags: <defaults>
</compile_context>

<pallas_src>
import numpy as np
import jax
import jax.numpy as jnp
from jax.experimental import pallas as pl
from jax.experimental.pallas import tpu as pltpu

# ---- module configuration (AnchorHeadSingle-like, 3 classes, KITTI-style) ----
NUM_CLASS = 3
CODE_SIZE = 7                 # ResidualCoder code size (x, y, z, dx, dy, dz, r)
NUM_DIR_BINS = 2
DIR_OFFSET = 0.78539          # model_cfg.DIR_OFFSET
DIR_LIMIT_OFFSET = 0.0        # model_cfg.DIR_LIMIT_OFFSET
NUM_ROTS = 2
NUM_ANCHORS_PER_LOC = NUM_CLASS * NUM_ROTS   # 6

PERIOD = 2.0 * np.pi / NUM_DIR_BINS
INV_PERIOD = 1.0 / PERIOD

LANE = 128
MAX_TILE_ROWS = 256           # 256*128 = 32768 anchors/tile: safe on v5e/v6e/v7x


# ----------------------------- Pallas kernel ---------------------------------
def _decode_kernel(anchors_ref, box_ref, dir_ref, box_out_ref):
    # anchors_ref: (8, T, 128)  [xa, ya, za, dxa, dya, dza, ra, diag] (batch-invariant)
    # box_ref:     (1, 7, T, 128) box residuals for one (batch, N-tile)
    # dir_ref:     (1, NUM_DIR_BINS, T, 128) direction logits
    # box_out_ref: (1, 7, T, 128) decoded boxes
    xa, ya, za = anchors_ref[0], anchors_ref[1], anchors_ref[2]
    dxa, dya, dza = anchors_ref[3], anchors_ref[4], anchors_ref[5]
    ra, diag = anchors_ref[6], anchors_ref[7]

    xt, yt, zt = box_ref[0, 0], box_ref[0, 1], box_ref[0, 2]
    dxt, dyt, dzt = box_ref[0, 3], box_ref[0, 4], box_ref[0, 5]
    rt = box_ref[0, 6]

    # ResidualCoder.decode_torch (diagonal precomputed in wrapper)
    box_out_ref[0, 0] = xt * diag + xa
    box_out_ref[0, 1] = yt * diag + ya
    box_out_ref[0, 2] = zt * dza + za
    box_out_ref[0, 3] = jnp.exp(dxt) * dxa
    box_out_ref[0, 4] = jnp.exp(dyt) * dya
    box_out_ref[0, 5] = jnp.exp(dzt) * dza

    # 2-bin direction argmax: first-max-wins (== torch.max / jnp.argmax tie-break)
    dir_labels = (dir_ref[0, 1] > dir_ref[0, 0]).astype(jnp.float32)

    # limit_period(rg - dir_offset, dir_limit_offset, period)
    rg = rt + ra
    val = rg - DIR_OFFSET
    arg = val * INV_PERIOD
    if DIR_LIMIT_OFFSET != 0.0:   # compile-time constant; 0 in this config
        arg = arg + DIR_LIMIT_OFFSET
    dir_rot = val - jnp.floor(arg) * PERIOD
    box_out_ref[0, 6] = dir_rot + DIR_OFFSET + PERIOD * dir_labels


# ------------------------------ JAX wrapper -----------------------------------
def generate_predicted_boxes(batch_size, cls_preds, box_preds, dir_cls_preds, anchors):
    """
    Args (NHWC head outputs, as in AnchorHeadSingle before decoding):
        cls_preds:     (B, H, W, NA*num_class)
        box_preds:     (B, H, W, NA*code_size)
        dir_cls_preds: (B, H, W, NA*num_dir_bins)
        anchors:       (H, W, NA, code_size)
    Returns:
        batch_cls_preds: (B, num_anchors, num_class)  float32
        batch_box_preds: (B, num_anchors, code_size)  float32 (decoded boxes)
    """
    anchors_flat = anchors.reshape(-1, CODE_SIZE).astype(jnp.float32)  # (N, 7)
    n_anchors = anchors_flat.shape[0]

    # cls is a pure reshape + cast: keep it out of the kernel entirely.
    batch_cls_preds = cls_preds.reshape(batch_size, n_anchors, NUM_CLASS).astype(jnp.float32)

    # Precompute the batch-invariant diagonal; pad anchor channels to 8 sublanes.
    diag = jnp.sqrt(anchors_flat[:, 3] ** 2 + anchors_flat[:, 4] ** 2)          # (N,)
    anchors8 = jnp.concatenate([anchors_flat, diag[:, None]], axis=-1)          # (N, 8)

    # ---- lane/sublane-dense layout: N -> (rows, 128) ----
    rows = pl.cdiv(n_anchors, LANE)
    if rows <= MAX_TILE_ROWS:
        tile_rows = rows                      # single N-tile; full-extent block
        padded_rows = rows
    else:
        tile_rows = MAX_TILE_ROWS             # multiple of 8 -> valid tiled block
        padded_rows = pl.cdiv(rows, tile_rows) * tile_rows
    n_pad = padded_rows * LANE

    def to_kernel_layout(x_bn_c, n_chan):
        # (B, N, C) -> (B, C, n_pad) -> (B, C, padded_rows, 128)
        x = x_bn_c.transpose(0, 2, 1)
        pad = n_pad - n_anchors
        if pad:
            x = jnp.pad(x, ((0, 0), (0, 0), (0, pad)))
        return x.reshape(batch_size, n_chan, padded_rows, LANE)

    box_t = to_kernel_layout(
        box_preds.reshape(batch_size, n_anchors, CODE_SIZE).astype(jnp.float32), CODE_SIZE)
    dir_t = to_kernel_layout(
        dir_cls_preds.reshape(batch_size, n_anchors, NUM_DIR_BINS).astype(jnp.float32),
        NUM_DIR_BINS)

    anchors_t = anchors8.T                                                      # (8, N)
    pad = n_pad - n_anchors
    if pad:
        anchors_t = jnp.pad(anchors_t, ((0, 0), (0, pad)))
    anchors_t = anchors_t.reshape(8, padded_rows, LANE)

    n_tiles = padded_rows // tile_rows

    box_out_t = pl.pallas_call(
        _decode_kernel,
        out_shape=jax.ShapeDtypeStruct(
            (batch_size, CODE_SIZE, padded_rows, LANE), jnp.float32),
        grid=(batch_size, n_tiles),
        in_specs=[
            pl.BlockSpec((8, tile_rows, LANE), lambda b, n: (0, n, 0)),
            pl.BlockSpec((1, CODE_SIZE, tile_rows, LANE), lambda b, n: (b, 0, n, 0)),
            pl.BlockSpec((1, NUM_DIR_BINS, tile_rows, LANE), lambda b, n: (b, 0, n, 0)),
        ],
        out_specs=pl.BlockSpec((1, CODE_SIZE, tile_rows, LANE),
                               lambda b, n: (b, 0, n, 0)),
        compiler_params=pltpu.CompilerParams(
            dimension_semantics=("parallel", "parallel"),
            vmem_limit_bytes=32 * 1024 * 1024,
        ),
    )(anchors_t, box_t, dir_t)

    # (B, 7, padded_rows, 128) -> (B, 7, n_pad) -> slice -> (B, N, 7)
    batch_box_preds = (box_out_t.reshape(batch_size, CODE_SIZE, n_pad)
                       [:, :, :n_anchors].transpose(0, 2, 1))
    # TODO(synk): downstream consumers (NMS/top-k) could consume the (B, 7, N)
    # layout directly and skip this final transpose.
    return batch_cls_preds, batch_box_preds


# ------------------- deterministic anchor generation (synthetic) --------------
def generate_anchors(grid_h, grid_w,
                     point_cloud_range=(0.0, -39.68, -3.0, 69.12, 39.68, 1.0)):
    sizes = np.array([[3.9, 1.6, 1.56],
                      [0.8, 0.6, 1.73],
                      [1.76, 0.6, 1.73]], dtype=np.float32)
    z_centers = np.array([-1.78, -0.6, -0.6], dtype=np.float32)
    rotations = np.array([0.0, np.pi / 2.0], dtype=np.float32)

    x_centers = np.linspace(point_cloud_range[0], point_cloud_range[3], grid_w,
                            dtype=np.float32)
    y_centers = np.linspace(point_cloud_range[1], point_cloud_range[4], grid_h,
                            dtype=np.float32)

    anchors = np.zeros((grid_h, grid_w, NUM_CLASS, NUM_ROTS, CODE_SIZE),
                       dtype=np.float32)
    for c in range(NUM_CLASS):
        for r in range(NUM_ROTS):
            anchors[:, :, c, r, 0] = x_centers[None, :]
            anchors[:, :, c, r, 1] = y_centers[:, None]
            anchors[:, :, c, r, 2] = z_centers[c]
            anchors[:, :, c, r, 3:6] = sizes[c]
            anchors[:, :, c, r, 6] = rotations[r]
    return anchors.reshape(grid_h, grid_w, NUM_ANCHORS_PER_LOC, CODE_SIZE)


# ------------------------------ pure-JAX reference ----------------------------
def _reference(batch_size, cls_preds, box_preds, dir_cls_preds, anchors):
    anchors_flat = anchors.reshape(-1, CODE_SIZE)
    n = anchors_flat.shape[0]
    a = jnp.broadcast_to(anchors_flat[None], (batch_size, n, CODE_SIZE))
    b = box_preds.reshape(batch_size, n, CODE_SIZE)
    xa, ya, za, dxa, dya, dza, ra = jnp.split(a, 7, axis=-1)
    xt, yt, zt, dxt, dyt, dzt, rt = jnp.split(b, 7, axis=-1)
    diag = jnp.sqrt(dxa ** 2 + dya ** 2)
    xg = xt * diag + xa
    yg = yt * diag + ya
    zg = zt * dza + za
    dxg = jnp.exp(dxt) * dxa
    dyg = jnp.exp(dyt) * dya
    dzg = jnp.exp(dzt) * dza
    rg = rt + ra
    dec = jnp.concatenate([xg, yg, zg, dxg, dyg, dzg, rg], axis=-1)

    dirs = dir_cls_preds.reshape(batch_size, n, NUM_DIR_BINS)
    dir_labels = jnp.argmax(dirs, axis=-1).astype(jnp.float32)
    val = dec[..., 6] - DIR_OFFSET
    dir_rot = val - jnp.floor(val / PERIOD + DIR_LIMIT_OFFSET) * PERIOD
    heading = dir_rot + DIR_OFFSET + PERIOD * dir_labels
    dec = dec.at[..., 6].set(heading)
    return cls_preds.reshape(batch_size, n, NUM_CLASS).astype(jnp.float32), dec


# ----------------------------------- main --------------------------------------
if __name__ == "__main__":
    # TODO(synk): forward() of AnchorHeadTemplate is abstract; training-time loss
    # functions (focal / smooth-L1 / dir CE) and target assignment are not part
    # of the inference path and are not implemented here.
    B, H, W = 2, 16, 16
    n_anchors = H * W * NUM_ANCHORS_PER_LOC   # 1536 anchors

    key = jax.random.PRNGKey(0)
    k1, k2, k3 = jax.random.split(key, 3)
    # NHWC head outputs (the head permutes NCHW conv outputs to NHWC before decode)
    cls_preds = jax.random.normal(k1, (B, H, W, NUM_ANCHORS_PER_LOC * NUM_CLASS),
                                  dtype=jnp.float32)
    box_preds = 0.1 * jax.random.normal(k2, (B, H, W, NUM_ANCHORS_PER_LOC * CODE_SIZE),
                                        dtype=jnp.float32)
    dir_preds = jax.random.normal(k3, (B, H, W, NUM_ANCHORS_PER_LOC * NUM_DIR_BINS),
                                  dtype=jnp.float32)

    anchors = jnp.asarray(generate_anchors(H, W))   # (H, W, NA, 7), deterministic

    batch_cls, batch_box = generate_predicted_boxes(B, cls_preds, box_preds,
                                                    dir_preds, anchors)
    jax.block_until_ready((batch_cls, batch_box))

    ref_cls, ref_box = _reference(B, cls_preds, box_preds, dir_preds, anchors)
    assert batch_cls.shape == (B, n_anchors, NUM_CLASS)
    assert batch_box.shape == (B, n_anchors, CODE_SIZE)
    np.testing.assert_allclose(np.asarray(batch_cls), np.asarray(ref_cls),
                               rtol=1e-5, atol=1e-5)
    np.testing.assert_allclose(np.asarray(batch_box), np.asarray(ref_box),
                               rtol=1e-5, atol=1e-4)
    print("KERNEL_OK")
</pallas_src>

<mosaic_0001>
module attributes {stable_mosaic.version = 11 : i64} {
  func.func @_decode_kernel(%arg0: i32, %arg1: i32, %arg2: memref<8x12x128xf32, #tpu.memory_space<vmem>>, %arg3: memref<1x7x12x128xf32, #tpu.memory_space<vmem>>, %arg4: memref<1x2x12x128xf32, #tpu.memory_space<vmem>>, %arg5: memref<1x7x12x128xf32, #tpu.memory_space<vmem>>) attributes {dimension_semantics = [#tpu.dimension_semantics<parallel>, #tpu.dimension_semantics<parallel>], iteration_bounds = array<i64: 2, 1>, scalar_prefetch = 0 : i64, scratch_operands = 0 : i64, tpu.core_type = #tpu.core_type<tc>, window_params = [{transform_indices = @transform_0, window_bounds = array<i64: 8, 12, 128>}, {transform_indices = @transform_1, window_bounds = array<i64: 1, 7, 12, 128>}, {transform_indices = @transform_2, window_bounds = array<i64: 1, 2, 12, 128>}, {transform_indices = @transform_3, window_bounds = array<i64: 1, 7, 12, 128>}]} {
    %c0 = arith.constant 0 : index
    %c0_0 = arith.constant 0 : index
    %c0_1 = arith.constant 0 : index
    %0 = vector.load %arg2[%c0, %c0_0, %c0_1] : memref<8x12x128xf32, #tpu.memory_space<vmem>>, vector<1x12x128xf32>
    %1 = vector.shape_cast %0 : vector<1x12x128xf32> to vector<12x128xf32>
    %c1 = arith.constant 1 : index
    %c0_2 = arith.constant 0 : index
    %c0_3 = arith.constant 0 : index
    %2 = vector.load %arg2[%c1, %c0_2, %c0_3] : memref<8x12x128xf32, #tpu.memory_space<vmem>>, vector<1x12x128xf32>
    %3 = vector.shape_cast %2 : vector<1x12x128xf32> to vector<12x128xf32>
    %c2 = arith.constant 2 : index
    %c0_4 = arith.constant 0 : index
    %c0_5 = arith.constant 0 : index
    %4 = vector.load %arg2[%c2, %c0_4, %c0_5] : memref<8x12x128xf32, #tpu.memory_space<vmem>>, vector<1x12x128xf32>
    %5 = vector.shape_cast %4 : vector<1x12x128xf32> to vector<12x128xf32>
    %c3 = arith.constant 3 : index
    %c0_6 = arith.constant 0 : index
    %c0_7 = arith.constant 0 : index
    %6 = vector.load %arg2[%c3, %c0_6, %c0_7] : memref<8x12x128xf32, #tpu.memory_space<vmem>>, vector<1x12x128xf32>
    %7 = vector.shape_cast %6 : vector<1x12x128xf32> to vector<12x128xf32>
    %c4 = arith.constant 4 : index
    %c0_8 = arith.constant 0 : index
    %c0_9 = arith.constant 0 : index
    %8 = vector.load %arg2[%c4, %c0_8, %c0_9] : memref<8x12x128xf32, #tpu.memory_space<vmem>>, vector<1x12x128xf32>
    %9 = vector.shape_cast %8 : vector<1x12x128xf32> to vector<12x128xf32>
    %c5 = arith.constant 5 : index
    %c0_10 = arith.constant 0 : index
    %c0_11 = arith.constant 0 : index
    %10 = vector.load %arg2[%c5, %c0_10, %c0_11] : memref<8x12x128xf32, #tpu.memory_space<vmem>>, vector<1x12x128xf32>
    %11 = vector.shape_cast %10 : vector<1x12x128xf32> to vector<12x128xf32>
    %c6 = arith.constant 6 : index
    %c0_12 = arith.constant 0 : index
    %c0_13 = arith.constant 0 : index
    %12 = vector.load %arg2[%c6, %c0_12, %c0_13] : memref<8x12x128xf32, #tpu.memory_space<vmem>>, vector<1x12x128xf32>
    %13 = vector.shape_cast %12 : vector<1x12x128xf32> to vector<12x128xf32>
    %c7 = arith.constant 7 : index
    %c0_14 = arith.constant 0 : index
    %c0_15 = arith.constant 0 : index
    %14 = vector.load %arg2[%c7, %c0_14, %c0_15] : memref<8x12x128xf32, #tpu.memory_space<vmem>>, vector<1x12x128xf32>
    %15 = vector.shape_cast %14 : vector<1x12x128xf32> to vector<12x128xf32>
    %c0_16 = arith.constant 0 : index
    %c0_17 = arith.constant 0 : index
    %c0_18 = arith.constant 0 : index
    %c0_19 = arith.constant 0 : index
    %16 = vector.load %arg3[%c0_16, %c0_17, %c0_18, %c0_19] : memref<1x7x12x128xf32, #tpu.memory_space<vmem>>, vector<1x1x12x128xf32>
    %17 = vector.shape_cast %16 : vector<1x1x12x128xf32> to vector<12x128xf32>
    %c0_20 = arith.constant 0 : index
    %c1_21 = arith.constant 1 : index
    %c0_22 = arith.constant 0 : index
    %c0_23 = arith.constant 0 : index
    %18 = vector.load %arg3[%c0_20, %c1_21, %c0_22, %c0_23] : memref<1x7x12x128xf32, #tpu.memory_space<vmem>>, vector<1x1x12x128xf32>
    %19 = vector.shape_cast %18 : vector<1x1x12x128xf32> to vector<12x128xf32>
    %c0_24 = arith.constant 0 : index
    %c2_25 = arith.constant 2 : index
    %c0_26 = arith.constant 0 : index
    %c0_27 = arith.constant 0 : index
    %20 = vector.load %arg3[%c0_24, %c2_25, %c0_26, %c0_27] : memref<1x7x12x128xf32, #tpu.memory_space<vmem>>, vector<1x1x12x128xf32>
    %21 = vector.shape_cast %20 : vector<1x1x12x128xf32> to vector<12x128xf32>
    %c0_28 = arith.constant 0 : index
    %c3_29 = arith.constant 3 : index
    %c0_30 = arith.constant 0 : index
    %c0_31 = arith.constant 0 : index
    %22 = vector.load %arg3[%c0_28, %c3_29, %c0_30, %c0_31] : memref<1x7x12x128xf32, #tpu.memory_space<vmem>>, vector<1x1x12x128xf32>
    %23 = vector.shape_cast %22 : vector<1x1x12x128xf32> to vector<12x128xf32>
    %c0_32 = arith.constant 0 : index
    %c4_33 = arith.constant 4 : index
    %c0_34 = arith.constant 0 : index
    %c0_35 = arith.constant 0 : index
    %24 = vector.load %arg3[%c0_32, %c4_33, %c0_34, %c0_35] : memref<1x7x12x128xf32, #tpu.memory_space<vmem>>, vector<1x1x12x128xf32>
    %25 = vector.shape_cast %24 : vector<1x1x12x128xf32> to vector<12x128xf32>
    %c0_36 = arith.constant 0 : index
    %c5_37 = arith.constant 5 : index
    %c0_38 = arith.constant 0 : index
    %c0_39 = arith.constant 0 : index
    %26 = vector.load %arg3[%c0_36, %c5_37, %c0_38, %c0_39] : memref<1x7x12x128xf32, #tpu.memory_space<vmem>>, vector<1x1x12x128xf32>
    %27 = vector.shape_cast %26 : vector<1x1x12x128xf32> to vector<12x128xf32>
    %c0_40 = arith.constant 0 : index
    %c6_41 = arith.constant 6 : index
    %c0_42 = arith.constant 0 : index
    %c0_43 = arith.constant 0 : index
    %28 = vector.load %arg3[%c0_40, %c6_41, %c0_42, %c0_43] : memref<1x7x12x128xf32, #tpu.memory_space<vmem>>, vector<1x1x12x128xf32>
    %29 = vector.shape_cast %28 : vector<1x1x12x128xf32> to vector<12x128xf32>
    %30 = arith.mulf %17, %15 : vector<12x128xf32>
    %31 = arith.addf %30, %1 : vector<12x128xf32>
    %c0_44 = arith.constant 0 : index
    %c0_45 = arith.constant 0 : index
    %c0_46 = arith.constant 0 : index
    %c0_47 = arith.constant 0 : index
    %32 = vector.load %arg5[%c0_44, %c0_45, %c0_46, %c0_47] : memref<1x7x12x128xf32, #tpu.memory_space<vmem>>, vector<1x1x12x128xf32>
    %33 = vector.shape_cast %32 : vector<1x1x12x128xf32> to vector<12x128xf32>
    %34 = vector.shape_cast %31 : vector<12x128xf32> to vector<1x1x12x128xf32>
    tpu.vector_store %arg5[%c0_44, %c0_45, %c0_46, %c0_47], %34 {strides = array<i32>} : memref<1x7x12x128xf32, #tpu.memory_space<vmem>>, vector<1x1x12x128xf32>,
    %35 = arith.mulf %19, %15 : vector<12x128xf32>
    %36 = arith.addf %35, %3 : vector<12x128xf32>
    %c0_48 = arith.constant 0 : index
    %c1_49 = arith.constant 1 : index
    %c0_50 = arith.constant 0 : index
    %c0_51 = arith.constant 0 : index
    %37 = vector.load %arg5[%c0_48, %c1_49, %c0_50, %c0_51] : memref<1x7x12x128xf32, #tpu.memory_space<vmem>>, vector<1x1x12x128xf32>
    %38 = vector.shape_cast %37 : vector<1x1x12x128xf32> to vector<12x128xf32>
    %39 = vector.shape_cast %36 : vector<12x128xf32> to vector<1x1x12x128xf32>
    tpu.vector_store %arg5[%c0_48, %c1_49, %c0_50, %c0_51], %39 {strides = array<i32>} : memref<1x7x12x128xf32, #tpu.memory_space<vmem>>, vector<1x1x12x128xf32>,
    %40 = arith.mulf %21, %11 : vector<12x128xf32>
    %41 = arith.addf %40, %5 : vector<12x128xf32>
    %c0_52 = arith.constant 0 : index
    %c2_53 = arith.constant 2 : index
    %c0_54 = arith.constant 0 : index
    %c0_55 = arith.constant 0 : index
    %42 = vector.load %arg5[%c0_52, %c2_53, %c0_54, %c0_55] : memref<1x7x12x128xf32, #tpu.memory_space<vmem>>, vector<1x1x12x128xf32>
    %43 = vector.shape_cast %42 : vector<1x1x12x128xf32> to vector<12x128xf32>
    %44 = vector.shape_cast %41 : vector<12x128xf32> to vector<1x1x12x128xf32>
    tpu.vector_store %arg5[%c0_52, %c2_53, %c0_54, %c0_55], %44 {strides = array<i32>} : memref<1x7x12x128xf32, #tpu.memory_space<vmem>>, vector<1x1x12x128xf32>,
    %45 = math.exp %23 : vector<12x128xf32>
    %46 = arith.mulf %45, %7 : vector<12x128xf32>
    %c0_56 = arith.constant 0 : index
    %c3_57 = arith.constant 3 : index
    %c0_58 = arith.constant 0 : index
    %c0_59 = arith.constant 0 : index
    %47 = vector.load %arg5[%c0_56, %c3_57, %c0_58, %c0_59] : memref<1x7x12x128xf32, #tpu.memory_space<vmem>>, vector<1x1x12x128xf32>
    %48 = vector.shape_cast %47 : vector<1x1x12x128xf32> to vector<12x128xf32>
    %49 = vector.shape_cast %46 : vector<12x128xf32> to vector<1x1x12x128xf32>
    tpu.vector_store %arg5[%c0_56, %c3_57, %c0_58, %c0_59], %49 {strides = array<i32>} : memref<1x7x12x128xf32, #tpu.memory_space<vmem>>, vector<1x1x12x128xf32>,
    %50 = math.exp %25 : vector<12x128xf32>
    %51 = arith.mulf %50, %9 : vector<12x128xf32>
    %c0_60 = arith.constant 0 : index
    %c4_61 = arith.constant 4 : index
    %c0_62 = arith.constant 0 : index
    %c0_63 = arith.constant 0 : index
    %52 = vector.load %arg5[%c0_60, %c4_61, %c0_62, %c0_63] : memref<1x7x12x128xf32, #tpu.memory_space<vmem>>, vector<1x1x12x128xf32>
    %53 = vector.shape_cast %52 : vector<1x1x12x128xf32> to vector<12x128xf32>
    %54 = vector.shape_cast %51 : vector<12x128xf32> to vector<1x1x12x128xf32>
    tpu.vector_store %arg5[%c0_60, %c4_61, %c0_62, %c0_63], %54 {strides = array<i32>} : memref<1x7x12x128xf32, #tpu.memory_space<vmem>>, vector<1x1x12x128xf32>,
    %55 = math.exp %27 : vector<12x128xf32>
    %56 = arith.mulf %55, %11 : vector<12x128xf32>
    %c0_64 = arith.constant 0 : index
    %c5_65 = arith.constant 5 : index
    %c0_66 = arith.constant 0 : index
    %c0_67 = arith.constant 0 : index
    %57 = vector.load %arg5[%c0_64, %c5_65, %c0_66, %c0_67] : memref<1x7x12x128xf32, #tpu.memory_space<vmem>>, vector<1x1x12x128xf32>
    %58 = vector.shape_cast %57 : vector<1x1x12x128xf32> to vector<12x128xf32>
    %59 = vector.shape_cast %56 : vector<12x128xf32> to vector<1x1x12x128xf32>
    tpu.vector_store %arg5[%c0_64, %c5_65, %c0_66, %c0_67], %59 {strides = array<i32>} : memref<1x7x12x128xf32, #tpu.memory_space<vmem>>, vector<1x1x12x128xf32>,
    %c0_68 = arith.constant 0 : index
    %c1_69 = arith.constant 1 : index
    %c0_70 = arith.constant 0 : index
    %c0_71 = arith.constant 0 : index
    %60 = vector.load %arg4[%c0_68, %c1_69, %c0_70, %c0_71] : memref<1x2x12x128xf32, #tpu.memory_space<vmem>>, vector<1x1x12x128xf32>
    %61 = vector.shape_cast %60 : vector<1x1x12x128xf32> to vector<12x128xf32>
    %c0_72 = arith.constant 0 : index
    %c0_73 = arith.constant 0 : index
    %c0_74 = arith.constant 0 : index
    %c0_75 = arith.constant 0 : index
    %62 = vector.load %arg4[%c0_72, %c0_73, %c0_74, %c0_75] : memref<1x2x12x128xf32, #tpu.memory_space<vmem>>, vector<1x1x12x128xf32>
    %63 = vector.shape_cast %62 : vector<1x1x12x128xf32> to vector<12x128xf32>
    %64 = arith.cmpf ogt, %61, %63 : vector<12x128xf32>
    %65 = arith.extui %64 : vector<12x128xi1> to vector<12x128xi32>
    %66 = arith.sitofp %65 : vector<12x128xi32> to vector<12x128xf32>
    %67 = arith.addf %29, %13 : vector<12x128xf32>
    %cst = arith.constant 7.853900e-01 : f32
    %68 = vector.broadcast %cst : f32 to vector<12x128xf32>
    %69 = arith.subf %67, %68 : vector<12x128xf32>
    %cst_76 = arith.constant 0.318309873 : f32
    %70 = vector.broadcast %cst_76 : f32 to vector<12x128xf32>
    %71 = arith.mulf %69, %70 : vector<12x128xf32>
    %72 = math.floor %71 : vector<12x128xf32>
    %cst_77 = arith.constant 3.14159274 : f32
    %73 = vector.broadcast %cst_77 : f32 to vector<12x128xf32>
    %74 = arith.mulf %72, %73 : vector<12x128xf32>
    %75 = arith.subf %69, %74 : vector<12x128xf32>
    %cst_78 = arith.constant 7.853900e-01 : f32
    %76 = vector.broadcast %cst_78 : f32 to vector<12x128xf32>
    %77 = arith.addf %75, %76 : vector<12x128xf32>
    %cst_79 = arith.constant 3.14159274 : f32
    %78 = vector.broadcast %cst_79 : f32 to vector<12x128xf32>
    %79 = arith.mulf %78, %66 : vector<12x128xf32>
    %80 = arith.addf %77, %79 : vector<12x128xf32>
    %c0_80 = arith.constant 0 : index
    %c6_81 = arith.constant 6 : index
    %c0_82 = arith.constant 0 : index
    %c0_83 = arith.constant 0 : index
    %81 = vector.load %arg5[%c0_80, %c6_81, %c0_82, %c0_83] : memref<1x7x12x128xf32, #tpu.memory_space<vmem>>, vector<1x1x12x128xf32>
    %82 = vector.shape_cast %81 : vector<1x1x12x128xf32> to vector<12x128xf32>
    %83 = vector.shape_cast %80 : vector<12x128xf32> to vector<1x1x12x128xf32>
    tpu.vector_store %arg5[%c0_80, %c6_81, %c0_82, %c0_83], %83 {strides = array<i32>} : memref<1x7x12x128xf32, #tpu.memory_space<vmem>>, vector<1x1x12x128xf32>,
    return
  }
  func.func @transform_0(%arg0: i32, %arg1: i32) -> (i32, i32, i32) {
    %c0_i32 = arith.constant 0 : i32
    %c0_i32_0 = arith.constant 0 : i32
    %c0_i32_1 = arith.constant 0 : i32
    return %c0_i32, %arg1, %c0_i32_0 : i32, i32, i32
  }
  func.func @transform_1(%arg0: i32, %arg1: i32) -> (i32, i32, i32, i32) {
    %c0_i32 = arith.constant 0 : i32
    %c0_i32_0 = arith.constant 0 : i32
    %c0_i32_1 = arith.constant 0 : i32
    return %arg0, %c0_i32, %arg1, %c0_i32_0 : i32, i32, i32, i32
  }
  func.func @transform_2(%arg0: i32, %arg1: i32) -> (i32, i32, i32, i32) {
    %c0_i32 = arith.constant 0 : i32
    %c0_i32_0 = arith.constant 0 : i32
    %c0_i32_1 = arith.constant 0 : i32
    return %arg0, %c0_i32, %arg1, %c0_i32_0 : i32, i32, i32, i32
  }
  func.func @transform_3(%arg0: i32, %arg1: i32) -> (i32, i32, i32, i32) {
    %c0_i32 = arith.constant 0 : i32
    %c0_i32_0 = arith.constant 0 : i32
    %c0_i32_1 = arith.constant 0 : i32
    return %arg0, %c0_i32, %arg1, %c0_i32_0 : i32, i32, i32, i32
  }
}

</mosaic_0001>

<llo_original>
// kernel: tpu_custom_call.1
$region0: #{tpu_custom_call.1}
  #allocation0 [shape = 'u32[]', space=smem, size = 0x4, offset = 0x4, fixed_abs, tag = 'smem constant byte address 0x4 - core index']
  #allocation1 [shape = 'u32[144,128]{1,0:T(1,128)}', space=vmem, size = 0x12000, scoped, tag = 'internal scratch']
  %s0 = inlined_call_operand.vmem [shape: f32[8,12,128], index: 0, kind: input, shape index: {}]
  %s1 = inlined_call_operand.vmem [shape: f32[2,7,12,128], index: 1, kind: input, shape index: {}]
  %s2 = inlined_call_operand.vmem [shape: f32[2,2,12,128], index: 2, kind: input, shape index: {}]
  %s3 = inlined_call_operand.vmem [shape: f32[2,7,12,128], index: 3, kind: output, shape index: {}]
  %s4 = sld [smem:[#allocation0]]
  $region45: #{tpu_custom_call.1} parent=0
    _
  %s6 = ssub.s32 1, %s4
  %s7 = scalar_select 0, %s6, %s4
  loop: start=0, step=1, limit=4
  $region2: #{tpu_custom_call.1} parent=0 // loop_pre_header
    _
  $region3: #{tpu_custom_call.1} parent=0 // loop_header
    %s9 = sphi 0, %s13
    %p10 = scmp.ge.s32.totalorder %s9, 4
    %s16 = sphi 0, %s28
    %s17 = sphi 0, %s24
    %s18 = sphi 0, %s16
    %s19 = sphi 0, %s17
    %s20 = sphi 0, %s18
    %s21 = sphi 0, %s19
    %s31 = sphi 0, %s33
    %s34 = sphi 0, %s31
    %s35 = sphi 0, %s34
    %s51 = sphi 0, %s35
    %s59 = sphi 0, %s61
    %s62 = sphi 0, %s59
    %s63 = sphi 0, %s62
    %s79 = sphi 0, %s63
    %s87 = sphi 0, %s89
    %s90 = sphi 0, %s87
    %s91 = sphi 0, %s90
    %s107 = sphi 0, %s91
    %s115 = sphi 0, %s117
    %s118 = sphi 0, %s115
    %s119 = sphi 0, %s118
    %s135 = sphi 0, %s119
  $region4: #{tpu_custom_call.1} parent=0 // loop_header_branch
    %12 = sbr.rel (%p10) target = $region8
  $region5: #{tpu_custom_call.1} parent=0 // loop_body
    %s14 = ssub.s32 %s9, 1
    %s15 = ssub.s32 %s9, 2
    %s22 = sadd.s32 1, %s17
    %p23 = scmp.ge.s32.totalorder %s22, 1
    %s24 = scalar_select %p23, 0, %s22
    %s25 = sadd.s32 1, %s16
    %s26 = scalar_select %p23, %s25, %s16
    %p27 = scmp.ge.s32.totalorder %s26, 2
    %s28 = scalar_select %p27, 0, %s26
    %s29 = ssub.s32 %s17, %s24
    %p30 = scmp.eq.s32.totalorder %s29, 0
    %s32 = sadd.s32 %s31, 1
    %s33 = scalar_select %p30, %s31, %s32
    %p36 = pneg %p30
    %p37 = scmp.eq.s32.totalorder %s9, 1
    %p38 = por %p36, %p37
    %p39 = scmp.ne.s32.totalorder %s31, %s34
    %p40 = scmp.eq.s32.totalorder %s9, 0
    %p41 = por %p39, %p40
    %p42 = scmp.ne.s32.totalorder %s31, %s34
    %p43 = scmp.eq.s32.totalorder %s14, 1
    %p44 = por %p42, %p43
    %p45 = scmp.ne.s32.totalorder %s34, %s35
    %p46 = scmp.eq.s32.totalorder %s14, 0
    %p47 = por %p45, %p46
    %p48 = scmp.ne.s32.totalorder %s34, %s35
    %p49 = scmp.eq.s32.totalorder %s15, 1
    %p50 = por %p48, %p49
    %p52 = scmp.ne.s32.totalorder %s35, %s51
    %p53 = scmp.eq.s32.totalorder %s15, 0
    %p54 = por %p52, %p53
    %s55 = ssub.s32 %s16, %s28
    %s56 = ssub.s32 %s17, %s24
    %s57 = sor.u32 %s55, %s56
    %p58 = scmp.eq.s32.totalorder %s57, 0
    %s60 = sadd.s32 %s59, 1
    %s61 = scalar_select %p58, %s59, %s60
    %p64 = pneg %p58
    %p65 = scmp.eq.s32.totalorder %s9, 1
    %p66 = por %p64, %p65
    %p67 = scmp.ne.s32.totalorder %s59, %s62
    %p68 = scmp.eq.s32.totalorder %s9, 0
    %p69 = por %p67, %p68
    %p70 = scmp.ne.s32.totalorder %s59, %s62
    %p71 = scmp.eq.s32.totalorder %s14, 1
    %p72 = por %p70, %p71
    %p73 = scmp.ne.s32.totalorder %s62, %s63
    %p74 = scmp.eq.s32.totalorder %s14, 0
    %p75 = por %p73, %p74
    %p76 = scmp.ne.s32.totalorder %s62, %s63
    %p77 = scmp.eq.s32.totalorder %s15, 1
    %p78 = por %p76, %p77
    %p80 = scmp.ne.s32.totalorder %s63, %s79
    %p81 = scmp.eq.s32.totalorder %s15, 0
    %p82 = por %p80, %p81
    %s83 = ssub.s32 %s16, %s28
    %s84 = ssub.s32 %s17, %s24
    %s85 = sor.u32 %s83, %s84
    %p86 = scmp.eq.s32.totalorder %s85, 0
    %s88 = sadd.s32 %s87, 1
    %s89 = scalar_select %p86, %s87, %s88
    %p92 = pneg %p86
    %p93 = scmp.eq.s32.totalorder %s9, 1
    %p94 = por %p92, %p93
    %p95 = scmp.ne.s32.totalorder %s87, %s90
    %p96 = scmp.eq.s32.totalorder %s9, 0
    %p97 = por %p95, %p96
    %p98 = scmp.ne.s32.totalorder %s87, %s90
    %p99 = scmp.eq.s32.totalorder %s14, 1
    %p100 = por %p98, %p99
    %p101 = scmp.ne.s32.totalorder %s90, %s91
    %p102 = scmp.eq.s32.totalorder %s14, 0
    %p103 = por %p101, %p102
    %p104 = scmp.ne.s32.totalorder %s90, %s91
    %p105 = scmp.eq.s32.totalorder %s15, 1
    %p106 = por %p104, %p105
    %p108 = scmp.ne.s32.totalorder %s91, %s107
    %p109 = scmp.eq.s32.totalorder %s15, 0
    %p110 = por %p108, %p109
    %s111 = ssub.s32 %s16, %s28
    %s112 = ssub.s32 %s17, %s24
    %s113 = sor.u32 %s111, %s112
    %p114 = scmp.eq.s32.totalorder %s113, 0
    %s116 = sadd.s32 %s115, 1
    %s117 = scalar_select %p114, %s115, %s116
    %p120 = pneg %p114
    %p121 = scmp.eq.s32.totalorder %s9, 1
    %p122 = por %p120, %p121
    %p123 = scmp.ne.s32.totalorder %s115, %s118
    %p124 = scmp.eq.s32.totalorder %s9, 0
    %p125 = por %p123, %p124
    %p126 = scmp.ne.s32.totalorder %s115, %s118
    %p127 = scmp.eq.s32.totalorder %s14, 1
    %p128 = por %p126, %p127
    %p129 = scmp.ne.s32.totalorder %s118, %s119
    %p130 = scmp.eq.s32.totalorder %s14, 0
    %p131 = por %p129, %p130
    %p132 = scmp.ne.s32.totalorder %s118, %s119
    %p133 = scmp.eq.s32.totalorder %s15, 1
    %p134 = por %p132, %p133
    %p136 = scmp.ne.s32.totalorder %s119, %s135
    %p137 = scmp.eq.s32.totalorder %s15, 0
    %p138 = por %p136, %p137
    %p139 = scmp.le.s32.totalorder 1, %s9
    %p140 = scmp.lt.s32.totalorder %s9, 3
    %p141 = pnand %p139, %p140
    %p142 = pneg %p141
    // Predicated region
    $region9: #{tpu_custom_call.1} parent=5 // pred_check
      _
    $region10: #{tpu_custom_call.1} parent=5 // pred_check_branch
      %144 = sbr.rel (%p141) target = $region12
    $region11: #{tpu_custom_call.1} parent=5 // pred_region
      %s145 = ssub.s32 %s9, 1
      // Predicated region
      $region13: #{tpu_custom_call.1} parent=11 // pred_check
        %p146 = pneg %p47
      $region14: #{tpu_custom_call.1} parent=11 // pred_check_branch
        %148 = sbr.rel (%p146) target = $region16
      $region15: #{tpu_custom_call.1} parent=11 // pred_region
        %s149 = smul.u32 2, %s19
        %p150 = scmp.lt.s32.totalorder %s149, 1
        %s151 = scalar_select %p150, %s149, 1
        %s152 = smul.addr %s151, 8
        %s153 = scalar_lea.vmem %s0, %s152
        %s154 = smul.u32 2, %s19
      $region16: #{tpu_custom_call.1} parent=11 // pred_fallthru
        _
    $region12: #{tpu_custom_call.1} parent=5 // pred_fallthru
      _
    %p155 = scmp.lt.s32.totalorder %s9, 2
    // Predicated region
    $region17: #{tpu_custom_call.1} parent=5 // pred_check
      %p156 = pneg %p155
    $region18: #{tpu_custom_call.1} parent=5 // pred_check_branch
      %158 = sbr.rel (%p156) target = $region20
    $region19: #{tpu_custom_call.1} parent=5 // pred_region
      // Predicated region
      $region21: #{tpu_custom_call.1} parent=19 // pred_check
        %p159 = pneg %p69
      $region22: #{tpu_custom_call.1} parent=19 // pred_check_branch
        %161 = sbr.rel (%p159) target = $region24
      $region23: #{tpu_custom_call.1} parent=19 // pred_region
        %s162 = smul.u32 2, %s17
        %p163 = scmp.lt.s32.totalorder %s16, 1
        %s164 = scalar_select %p163, %s16, 1
        %p165 = scmp.lt.s32.totalorder %s162, 1
        %s166 = scalar_select %p165, %s162, 1
        %s167 = smul.addr %s164, 14
        %s168 = sadd.s32 %s166, %s167
        %s169 = smul.addr %s168, 8
        %s170 = scalar_lea.vmem %s1, %s169
        %s171 = smul.u32 2, %s17
      $region24: #{tpu_custom_call.1} parent=19 // pred_fallthru
        _
      // Predicated region
      $region25: #{tpu_custom_call.1} parent=19 // pred_check
        %p172 = pneg %p97
      $region26: #{tpu_custom_call.1} parent=19 // pred_check_branch
        %174 = sbr.rel (%p172) target = $region28
      $region27: #{tpu_custom_call.1} parent=19 // pred_region
        %s175 = smul.u32 2, %s17
        %p176 = scmp.lt.s32.totalorder %s16, 1
        %s177 = scalar_select %p176, %s16, 1
        %p178 = scmp.lt.s32.totalorder %s175, 1
        %s179 = scalar_select %p178, %s175, 1
        %s180 = smul.addr %s177, 4
        %s181 = sadd.s32 %s179, %s180
        %s182 = smul.addr %s181, 8
        %s183 = scalar_lea.vmem %s2, %s182
        %s184 = smul.u32 2, %s17
      $region28: #{tpu_custom_call.1} parent=19 // pred_fallthru
        _
    $region20: #{tpu_custom_call.1} parent=5 // pred_fallthru
      _
    %p185 = scmp.le.s32.totalorder 1, %s9
    %p186 = scmp.lt.s32.totalorder %s9, 3
    %p187 = pnand %p185, %p186
    %p188 = pneg %p187
    // Predicated region
    $region29: #{tpu_custom_call.1} parent=5 // pred_check
      _
    $region30: #{tpu_custom_call.1} parent=5 // pred_check_branch
      %190 = sbr.rel (%p187) target = $region32
    $region31: #{tpu_custom_call.1} parent=5 // pred_region
      %s191 = ssub.s32 %s9, 1
      %s192 = smul.u32 2, %s19
      %p193 = scmp.lt.s32.totalorder %s192, 1
      %s194 = scalar_select %p193, %s192, 1
      %s195 = smul.addr %s194, 8
      %s196 = scalar_lea.vmem %s0, %s195
      %p197 = pneg %p47
      %p198 = pneg %p44
      %s199 = smul.u32 2, %s19
      %p200 = scmp.lt.s32.totalorder %s18, 1
      %s201 = scalar_select %p200, %s18, 1
      %p202 = scmp.lt.s32.totalorder %s199, 1
      %s203 = scalar_select %p202, %s199, 1
      %s204 = smul.addr %s201, 14
      %s205 = sadd.s32 %s203, %s204
      %s206 = smul.addr %s205, 8
      %s207 = scalar_lea.vmem %s1, %s206
      %p208 = pneg %p75
      %p209 = pneg %p72
      %s210 = smul.u32 2, %s19
      %p211 = scmp.lt.s32.totalorder %s18, 1
      %s212 = scalar_select %p211, %s18, 1
      %p213 = scmp.lt.s32.totalorder %s210, 1
      %s214 = scalar_select %p213, %s210, 1
      %s215 = smul.addr %s212, 4
      %s216 = sadd.s32 %s214, %s215
      %s217 = smul.addr %s216, 8
      %s218 = scalar_lea.vmem %s2, %s217
      %p219 = pneg %p103
      %p220 = pneg %p100
      %p221 = pneg %p131
      %p222 = pneg %p128
      %s223 = smul.u32 2, %s19
      %p224 = scmp.lt.s32.totalorder %s18, 1
      %s225 = scalar_select %p224, %s18, 1
      %p226 = scmp.lt.s32.totalorder %s223, 1
      %s227 = scalar_select %p226, %s223, 1
      %s228 = smul.addr %s225, 14
      %s229 = sadd.s32 %s227, %s228
      %s230 = smul.addr %s229, 8
      %s231 = scalar_lea.vmem %s3, %s230
      %s232 = smul.u32 2, %s19
      %p233 = scmp.lt.s32.totalorder %s232, 1
      %s234 = scalar_select %p233, %s232, 1
      %s235 = smul.addr %s234, 8
      %s236 = scalar_lea.vmem %s0, %s235
      %s237 = smul.u32 2, %s19
      %s238 = smul.u32 2, %s19
      %p239 = scmp.lt.s32.totalorder %s18, 1
      %s240 = scalar_select %p239, %s18, 1
      %p241 = scmp.lt.s32.totalorder %s238, 1
      %s242 = scalar_select %p241, %s238, 1
      %s243 = smul.addr %s240, 14
      %s244 = sadd.s32 %s242, %s243
      %s245 = smul.addr %s244, 8
      %s246 = scalar_lea.vmem %s1, %s245
      %s247 = smul.u32 2, %s19
      %s248 = smul.u32 2, %s19
      %p249 = scmp.lt.s32.totalorder %s18, 1
      %s250 = scalar_select %p249, %s18, 1
      %p251 = scmp.lt.s32.totalorder %s248, 1
      %s252 = scalar_select %p251, %s248, 1
      %s253 = smul.addr %s250, 4
      %s254 = sadd.s32 %s252, %s253
      %s255 = smul.addr %s254, 8
      %s256 = scalar_lea.vmem %s2, %s255
      %s257 = smul.u32 2, %s19
      %s258 = smul.u32 2, %s19
      %p259 = scmp.lt.s32.totalorder %s18, 1
      %s260 = scalar_select %p259, %s18, 1
      %p261 = scmp.lt.s32.totalorder %s258, 1
      %s262 = scalar_select %p261, %s258, 1
      %s263 = smul.addr %s260, 14
      %s264 = sadd.s32 %s262, %s263
      %s265 = smul.addr %s264, 8
      %s266 = scalar_lea.vmem %s3, %s265
      %s267 = smul.u32 2, %s19
      %v268 = vld [vmem:[%s236] sm:$0xff]
      %v269 = vld [vmem:[%s236 + $0x8] sm:$0xf]
      %s270 = scalar_lea.vmem %s236, 16
      %v271 = vld [vmem:[%s270] sm:$0xff]
      %v272 = vld [vmem:[%s270 + $0x8] sm:$0xf]
      %s273 = scalar_lea.vmem %s236, 32
      %v274 = vld [vmem:[%s273] sm:$0xff]
      %v275 = vld [vmem:[%s273 + $0x8] sm:$0xf]
      %s276 = scalar_lea.vmem %s236, 48
      %v277 = vld [vmem:[%s276] sm:$0xff]
      %v278 = vld [vmem:[%s276 + $0x8] sm:$0xf]
      %s279 = scalar_lea.vmem %s236, 64
      %v280 = vld [vmem:[%s279] sm:$0xff]
      %v281 = vld [vmem:[%s279 + $0x8] sm:$0xf]
      %s282 = scalar_lea.vmem %s236, 80
      %v283 = vld [vmem:[%s282] sm:$0xff]
      %v284 = vld [vmem:[%s282 + $0x8] sm:$0xf]
      %s285 = scalar_lea.vmem %s236, 96
      %v286 = vld [vmem:[%s285] sm:$0xff]
      %v287 = vld [vmem:[%s285 + $0x8] sm:$0xf]
      %s288 = scalar_lea.vmem %s236, 112
      %v289 = vld [vmem:[%s288] sm:$0xff]
      %v290 = vld [vmem:[%s288 + $0x8] sm:$0xf]
      %v291 = vld [vmem:[%s246] sm:$0xff]
      %v292 = vld [vmem:[%s246 + $0x8] sm:$0xf]
      %s293 = scalar_lea.vmem %s246, 16
      %v294 = vld [vmem:[%s293] sm:$0xff]
      %v295 = vld [vmem:[%s293 + $0x8] sm:$0xf]
      %s296 = scalar_lea.vmem %s246, 32
      %v297 = vld [vmem:[%s296] sm:$0xff]
      %v298 = vld [vmem:[%s296 + $0x8] sm:$0xf]
      %s299 = scalar_lea.vmem %s246, 48
      %v300 = vld [vmem:[%s299] sm:$0xff]
      %v301 = vld [vmem:[%s299 + $0x8] sm:$0xf]
      %s302 = scalar_lea.vmem %s246, 64
      %v303 = vld [vmem:[%s302] sm:$0xff]
      %v304 = vld [vmem:[%s302 + $0x8] sm:$0xf]
      %s305 = scalar_lea.vmem %s246, 80
      %v306 = vld [vmem:[%s305] sm:$0xff]
      %v307 = vld [vmem:[%s305 + $0x8] sm:$0xf]
      %s308 = scalar_lea.vmem %s246, 96
      %v309 = vld [vmem:[%s308] sm:$0xff]
      %v310 = vld [vmem:[%s308 + $0x8] sm:$0xf]
      %v311 = vmul.f32 %v291, %v289
      %v312 = vmul.f32 %v292, %v290
      %v313 = vadd.f32 %v311, %v268
      %v314 = vadd.f32 %v312, %v269
      %315 = vst [vmem:[%s266] sm:$0xff] %v313
      %316 = vst [vmem:[%s266 + $0x8] sm:$0xf] %v314
      %v317 = vmul.f32 %v294, %v289
      %v318 = vmul.f32 %v295, %v290
      %v319 = vadd.f32 %v317, %v271
      %v320 = vadd.f32 %v318, %v272
      %s321 = scalar_lea.vmem %s266, 16
      %322 = vst [vmem:[%s321] sm:$0xff] %v319
      %323 = vst [vmem:[%s321 + $0x8] sm:$0xf] %v320
      %v324 = vmul.f32 %v297, %v283
      %v325 = vmul.f32 %v298, %v284
      %v326 = vadd.f32 %v324, %v274
      %v327 = vadd.f32 %v325, %v275
      %s328 = scalar_lea.vmem %s266, 32
      %329 = vst [vmem:[%s328] sm:$0xff] %v326
      %330 = vst [vmem:[%s328 + $0x8] sm:$0xf] %v327
      %v331 = vmul.f32 %v300, 1.442695
      %v332 = vpow.pop %v331
      %v333 = vmul.f32 %v301, 1.442695
      %v334 = vpow.pop %v333
      %v335 = vmul.f32 %v332, %v277
      %v336 = vmul.f32 %v334, %v278
      %s337 = scalar_lea.vmem %s266, 48
      %338 = vst [vmem:[%s337] sm:$0xff] %v335
      %339 = vst [vmem:[%s337 + $0x8] sm:$0xf] %v336
      %v340 = vmul.f32 %v303, 1.442695
      %v341 = vpow.pop %v340
      %v342 = vmul.f32 %v304, 1.442695
      %v343 = vpow.pop %v342
      %v344 = vmul.f32 %v341, %v280
      %v345 = vmul.f32 %v343, %v281
      %s346 = scalar_lea.vmem %s266, 64
      %347 = vst [vmem:[%s346] sm:$0xff] %v344
      %348 = vst [vmem:[%s346 + $0x8] sm:$0xf] %v345
      %v349 = vmul.f32 %v306, 1.442695
      %v350 = vpow.pop %v349
      %v351 = vmul.f32 %v307, 1.442695
      %v352 = vpow.pop %v351
      %v353 = vmul.f32 %v350, %v283
      %v354 = vmul.f32 %v352, %v284
      %s355 = scalar_lea.vmem %s266, 80
      %356 = vst [vmem:[%s355] sm:$0xff] %v353
      %357 = vst [vmem:[%s355 + $0x8] sm:$0xf] %v354
      %s358 = scalar_lea.vmem %s256, 16
      %v359 = vld [vmem:[%s358] sm:$0xff]
      %v360 = vld [vmem:[%s358 + $0x8] sm:$0xf]
      %v361 = vld [vmem:[%s256] sm:$0xff]
      %v362 = vld [vmem:[%s256 + $0x8] sm:$0xf]
      %vm363 = vcmp.gt.f32.partialorder %v359, %v361
      %vm364 = vcmp.gt.f32.partialorder %v360, %v362
      %v365 = vsel %vm363, 1, 0
      %v366 = vsel %vm364, 1, 0
      %v367 = vcvt.s32.f32 %v365
      %v368 = vcvt.s32.f32 %v366
      %v369 = vadd.f32 %v309, %v286
      %v370 = vadd.f32 %v310, %v287
      %v371 = vsub.f32 %v369, 0.78539
      %v372 = vsub.f32 %v370, 0.78539
      %v373 = vmul.f32 %v371, 0.31830987
      %v374 = vmul.f32 %v372, 0.31830987
      %v375 = vfloor.f32 %v373
      %v376 = vfloor.f32 %v374
      %v377 = vmul.f32 %v375, 3.1415927
      %v378 = vmul.f32 %v376, 3.1415927
      %v379 = vsub.f32 %v371, %v377
      %v380 = vsub.f32 %v372, %v378
      %v381 = vadd.f32 %v379, 0.78539
      %v382 = vadd.f32 %v380, 0.78539
      %v383 = vmul.f32 %v367, 3.1415927
      %v384 = vmul.f32 %v368, 3.1415927
      %v385 = vadd.f32 %v381, %v383
      %v386 = vadd.f32 %v382, %v384
      %s387 = scalar_lea.vmem %s266, 96
      %388 = vst [vmem:[%s387] sm:$0xff] %v385
      %389 = vst [vmem:[%s387 + $0x8] sm:$0xf] %v386
      %s390 = smul.u32 2, %s19
      %p391 = scmp.lt.s32.totalorder %s18, 1
      %s392 = scalar_select %p391, %s18, 1
      %p393 = scmp.lt.s32.totalorder %s390, 1
      %s394 = scalar_select %p393, %s390, 1
      %s395 = smul.addr %s392, 14
      %s396 = sadd.s32 %s394, %s395
      %s397 = smul.addr %s396, 8
      %s398 = scalar_lea.vmem %s3, %s397
      // Predicated region
      $region33: #{tpu_custom_call.1} parent=31 // pred_check
        %p399 = pneg %p128
      $region34: #{tpu_custom_call.1} parent=31 // pred_check_branch
        %401 = sbr.rel (%p399) target = $region36
      $region35: #{tpu_custom_call.1} parent=31 // pred_region
        %s402 = smul.u32 2, %s19
      $region36: #{tpu_custom_call.1} parent=31 // pred_fallthru
        _
    $region32: #{tpu_custom_call.1} parent=5 // pred_fallthru
      _
    %p403 = scmp.le.s32.totalorder 2, %s9
    // Predicated region
    $region37: #{tpu_custom_call.1} parent=5 // pred_check
      %p404 = pneg %p403
    $region38: #{tpu_custom_call.1} parent=5 // pred_check_branch
      %406 = sbr.rel (%p404) target = $region40
    $region39: #{tpu_custom_call.1} parent=5 // pred_region
      %s407 = ssub.s32 %s9, 2
      // Predicated region
      $region41: #{tpu_custom_call.1} parent=39 // pred_check
        %p408 = pneg %p134
      $region42: #{tpu_custom_call.1} parent=39 // pred_check_branch
        %410 = sbr.rel (%p408) target = $region44
      $region43: #{tpu_custom_call.1} parent=39 // pred_region
        %s411 = smul.u32 2, %s21
        %p412 = scmp.lt.s32.totalorder %s20, 1
        %s413 = scalar_select %p412, %s20, 1
        %p414 = scmp.lt.s32.totalorder %s411, 1
        %s415 = scalar_select %p414, %s411, 1
        %s416 = smul.addr %s413, 14
        %s417 = sadd.s32 %s415, %s416
        %s418 = smul.addr %s417, 8
        %s419 = scalar_lea.vmem %s3, %s418
      $region44: #{tpu_custom_call.1} parent=39 // pred_fallthru
        _
    $region40: #{tpu_custom_call.1} parent=5 // pred_fallthru
      _
  $region6: #{tpu_custom_call.1} parent=0 // loop_footer
    %s13 = sadd.s32 1, %s9
  $region7: #{tpu_custom_call.1} parent=0 // loop_footer_branch
    %8 = sbr.rel target = $region3
  $region8: #{tpu_custom_call.1} parent=0 // loop_exit
    _

</llo_original>
